<compile_context>
chip_gen: v7x
topology: tpu7x:2x2x1
jax: 0.10.0
libtpu: 0.0.40
codegen_flags: <defaults>
</compile_context>

<pallas_src>
import functools

import jax
import jax.numpy as jnp
from jax.experimental import pallas as pl
from jax.experimental.pallas import tpu as pltpu

N_HIDDEN = 10


def qnet_kernel(obs_ref, act_ref, w1o_ref, w1a_ref, b1_ref,
                w2_ref, b2_ref, w3_ref, b3_ref, out_ref):
    """One batch tile of the MLP, feature-major: activation tiles are (feat, TM)."""
    # Layer 1: split-W1 replaces the concat:  W1 @ [obs; act] == W1_obs@obs + W1_act@act.
    # bf16 operands -> f32 accumulation on the MXU; bias + ReLU stay f32.
    h1 = (jnp.dot(w1o_ref[...], obs_ref[...], preferred_element_type=jnp.float32)
          + jnp.dot(w1a_ref[...], act_ref[...], preferred_element_type=jnp.float32)
          + b1_ref[...])                                   # (10, TM) + (10, 1)
    h1 = jnp.maximum(h1, 0.0).astype(jnp.bfloat16)

    # Layer 2
    h2 = jnp.dot(w2_ref[...], h1, preferred_element_type=jnp.float32) + b2_ref[...]
    h2 = jnp.maximum(h2, 0.0).astype(jnp.bfloat16)

    # Head: (1, 10) @ (10, TM) -> (1, TM): lane-dense output row.
    q = jnp.dot(w3_ref[...], h2, preferred_element_type=jnp.float32) + b3_ref[...]
    out_ref[...] = q.astype(out_ref.dtype)
    # TODO(synk): if a bundle dump shows the K<=10 contractions padded to the full MXU dim
    # (128/256) instead of the sublane tile, re-express the layers as unrolled VPU
    # broadcast-MACs; if vld/vst slots saturate, process 512-lane sub-blocks with
    # lax.fori_loop(unroll=True) so h1/h2 stay in vregs.


def _round_up(x, m):
    return (x + m - 1) // m * m


def _vmem_capacity_bytes():
    try:
        return int(pltpu.get_tpu_info().vmem_capacity_bytes)
    except Exception:
        return 64 * 1024 * 1024   # conservative fallback (v7x per-TC VMEM)


_VMEM_CAP_BYTES = _vmem_capacity_bytes()

# Rough per-lane (per batch column) VMEM footprint of one tile: two bf16 input tiles
# (sublane-padded to 16, double-buffered), the double-buffered f32 (1, TM) output row
# (padded to 8 sublanes) and the f32/bf16 hidden temporaries.  Used to clamp the tile so
# the working set stays well inside VMEM on every generation (incl. v7x's 64 MiB).
_VMEM_BYTES_PER_LANE = 512


@functools.partial(jax.jit, static_argnames=("tile_b",))
def qnet_forward_fm(action_fm, obs_fm, params, *, tile_b=65536):
    """Feature-major entry point: action_fm (act_dim, B) and obs_fm (obs_dim, B), bf16."""
    w1o, w1a, b1, w2, b2, w3, b3 = params
    obs_dim, batch = obs_fm.shape
    act_dim = action_fm.shape[0]
    in_dim = obs_dim + act_dim

    # Batch tile: always a multiple of 128 (lane axis), clamped to the batch and to the
    # per-generation VMEM budget.  No batch padding: the last grid tile may be partial
    # (OOB input lanes are garbage but column-independent; OOB output lanes are masked).
    vmem_budget = int(_VMEM_CAP_BYTES * 0.6)
    max_tm = max(128, (vmem_budget // _VMEM_BYTES_PER_LANE) // 128 * 128)
    tm = min(_round_up(tile_b, 128), _round_up(batch, 128), max_tm)
    if batch >= 2 * 128:
        # Keep >= 2 tiles when possible so both v7x TensorCores get work; on 1-TC chips
        # this costs at most one extra grid step (~0.35 us).
        tm = min(tm, _round_up(pl.cdiv(batch, 2), 128))
    n_tiles = pl.cdiv(batch, tm)

    const = lambda i: (0, 0)   # weights/biases: full-array blocks, VMEM-resident
    in_specs = [
        pl.BlockSpec((obs_dim, tm), lambda i: (0, i)),
        pl.BlockSpec((act_dim, tm), lambda i: (0, i)),
        pl.BlockSpec(w1o.shape, const),
        pl.BlockSpec(w1a.shape, const),
        pl.BlockSpec(b1.shape, const),
        pl.BlockSpec(w2.shape, const),
        pl.BlockSpec(b2.shape, const),
        pl.BlockSpec(w3.shape, const),
        pl.BlockSpec(b3.shape, const),
    ]
    out_spec = pl.BlockSpec((1, tm), lambda i: (0, i))

    flops = 2 * batch * (in_dim * N_HIDDEN + N_HIDDEN * N_HIDDEN + N_HIDDEN)
    bytes_accessed = (2 * batch * in_dim + 4 * batch                    # bf16 in, f32 out
                      + 2 * (in_dim * N_HIDDEN + N_HIDDEN * N_HIDDEN + N_HIDDEN)
                      + 4 * (2 * N_HIDDEN + 1))

    q_row = pl.pallas_call(
        qnet_kernel,
        out_shape=jax.ShapeDtypeStruct((1, batch), jnp.float32),
        grid=(n_tiles,),
        in_specs=in_specs,
        out_specs=out_spec,
        compiler_params=pltpu.CompilerParams(
            # TODO(synk): on v7x confirm in xprof that the batch axis is megacore-sharded;
            # switch to pltpu.CORE_PARALLEL / an explicit core axis if it is not.
            dimension_semantics=("parallel",),
            vmem_limit_bytes=int(_VMEM_CAP_BYTES * 0.9)),
        cost_estimate=pl.CostEstimate(
            flops=flops, transcendentals=0, bytes_accessed=bytes_accessed),
    )(obs_fm, action_fm, w1o, w1a, b1, w2, b2, w3, b3)

    return q_row.reshape(batch, 1)


@functools.partial(jax.jit, static_argnames=("tile_b",))
def qnet_forward(action, obs, params, *, tile_b=65536):
    """Mirrors QNet.forward(action, obs) on batch-major (B, feat) f32 inputs -> (B, 1).

    The transpose+cast to feature-major bf16 is one fused XLA copy; producers that can emit
    (feat, B) bf16 directly should call qnet_forward_fm and skip this copy entirely.
    """
    # TODO(synk): if inputs must stay batch-major, try CompilerParams(allow_input_fusion)
    # to fold this layout change into the pallas_call operand fetch.
    obs_fm = obs.astype(jnp.bfloat16).T
    act_fm = action.astype(jnp.bfloat16).T
    return qnet_forward_fm(act_fm, obs_fm, params, tile_b=tile_b)


def init_params(key, obs_dim, act_dim):
    """Deterministic synthetic nn.Linear-style init (torch (out, in) weight layout).

    Weights are stored bf16 (MXU operands, cast once here); biases stay f32.
    Returns: (w1_obs (10, obs), w1_act (10, act), b1 (10, 1),
              w2 (10, 10), b2 (10, 1), w3 (1, 10), b3 (1, 1))
    """
    in_dim = obs_dim + act_dim
    dims = [(in_dim, N_HIDDEN), (N_HIDDEN, N_HIDDEN), (N_HIDDEN, 1)]
    raw = []
    for i, (d_in, d_out) in enumerate(dims):
        kw, kb = jax.random.split(jax.random.fold_in(key, i))
        bound = 1.0 / (d_in ** 0.5)
        w = jax.random.uniform(kw, (d_out, d_in), jnp.float32, -bound, bound)
        b = jax.random.uniform(kb, (d_out, 1), jnp.float32, -bound, bound)
        raw.append((w, b))
    (w1, b1), (w2, b2), (w3, b3) = raw
    # forward() concatenates [obs, action]: first obs_dim input columns belong to obs.
    w1_obs = w1[:, :obs_dim].astype(jnp.bfloat16)
    w1_act = w1[:, obs_dim:].astype(jnp.bfloat16)
    return (w1_obs, w1_act, b1,
            w2.astype(jnp.bfloat16), b2,
            w3.astype(jnp.bfloat16), b3)


def qnet_reference(action, obs, params):
    """Pure-JAX reference of the PyTorch forward, with the same bf16 operand rounding."""
    w1o, w1a, b1, w2, b2, w3, b3 = params
    f32 = lambda a: a.astype(jnp.float32)
    bf = lambda a: a.astype(jnp.bfloat16).astype(jnp.float32)
    h1 = jnp.maximum(bf(obs) @ f32(w1o).T + bf(action) @ f32(w1a).T + b1.T, 0.0)
    h2 = jnp.maximum(bf(h1) @ f32(w2).T + b2.T, 0.0)
    return bf(h2) @ f32(w3).T + b3.T


if __name__ == "__main__":
    key = jax.random.PRNGKey(0)
    k_obs, k_act, k_param = jax.random.split(key, 3)

    batch, obs_dim, act_dim = 8, 6, 4
    obs = jax.random.normal(k_obs, (batch, obs_dim), jnp.float32)
    action = jax.random.normal(k_act, (batch, act_dim), jnp.float32)
    params = init_params(k_param, obs_dim, act_dim)

    out = jax.block_until_ready(qnet_forward(action, obs, params))
    ref = qnet_reference(action, obs, params)
    assert out.shape == (batch, 1)
    assert jnp.allclose(out, ref, atol=2e-3, rtol=2e-3)

    # Exercise the multi-tile + partial-edge-tile path (batch not a multiple of the tile).
    batch2 = 300
    k_obs2, k_act2 = jax.random.split(jax.random.fold_in(key, 7))
    obs2 = jax.random.normal(k_obs2, (batch2, obs_dim), jnp.float32)
    act2 = jax.random.normal(k_act2, (batch2, act_dim), jnp.float32)
    out2 = jax.block_until_ready(qnet_forward(act2, obs2, params, tile_b=256))
    ref2 = qnet_reference(act2, obs2, params)
    assert out2.shape == (batch2, 1)
    assert jnp.allclose(out2, ref2, atol=2e-3, rtol=2e-3)

    print("KERNEL_OK")
</pallas_src>

<mosaic_0001>
module attributes {stable_mosaic.version = 11 : i64} {
  func.func @qnet_kernel(%arg0: i32, %arg1: memref<6x128xbf16, #tpu.memory_space<vmem>>, %arg2: memref<4x128xbf16, #tpu.memory_space<vmem>>, %arg3: memref<10x6xbf16, #tpu.memory_space<vmem>>, %arg4: memref<10x4xbf16, #tpu.memory_space<vmem>>, %arg5: memref<10x1xf32, #tpu.memory_space<vmem>>, %arg6: memref<10x10xbf16, #tpu.memory_space<vmem>>, %arg7: memref<10x1xf32, #tpu.memory_space<vmem>>, %arg8: memref<1x10xbf16, #tpu.memory_space<vmem>>, %arg9: memref<1x1xf32, #tpu.memory_space<vmem>>, %arg10: memref<1x128xf32, #tpu.memory_space<vmem>>) attributes {dimension_semantics = [#tpu.dimension_semantics<parallel>], iteration_bounds = array<i64: 1>, scalar_prefetch = 0 : i64, scratch_operands = 0 : i64, tpu.core_type = #tpu.core_type<tc>, window_params = [{transform_indices = @transform_0, window_bounds = array<i64: 6, 128>}, {transform_indices = @transform_1, window_bounds = array<i64: 4, 128>}, {pipeline_mode = #tpu.pipeline_mode<synchronous>, transform_indices = @transform_2, window_bounds = array<i64: 10, 6>}, {pipeline_mode = #tpu.pipeline_mode<synchronous>, transform_indices = @transform_3, window_bounds = array<i64: 10, 4>}, {pipeline_mode = #tpu.pipeline_mode<synchronous>, transform_indices = @transform_4, window_bounds = array<i64: 10, 1>}, {pipeline_mode = #tpu.pipeline_mode<synchronous>, transform_indices = @transform_5, window_bounds = array<i64: 10, 10>}, {pipeline_mode = #tpu.pipeline_mode<synchronous>, transform_indices = @transform_6, window_bounds = array<i64: 10, 1>}, {pipeline_mode = #tpu.pipeline_mode<synchronous>, transform_indices = @transform_7, window_bounds = array<i64: 1, 10>}, {pipeline_mode = #tpu.pipeline_mode<synchronous>, transform_indices = @transform_8, window_bounds = array<i64: 1, 1>}, {transform_indices = @transform_9, window_bounds = array<i64: 1, 128>}]} {
    %c0 = arith.constant 0 : index
    %c0_0 = arith.constant 0 : index
    %0 = vector.load %arg3[%c0, %c0_0] : memref<10x6xbf16, #tpu.memory_space<vmem>>, vector<10x6xbf16>
    %c0_1 = arith.constant 0 : index
    %c0_2 = arith.constant 0 : index
    %1 = vector.load %arg1[%c0_1, %c0_2] : memref<6x128xbf16, #tpu.memory_space<vmem>>, vector<6x128xbf16>
    %cst = arith.constant dense<0.000000e+00> : vector<10x128xf32>
    %2 = tpu.matmul %0, %1, %cst {dimension_numbers = #tpu.dot_dimension_numbers<[1], [0], [0], [1], [0, 0, 1, 1], [], []>} : vector<10x6xbf16>, vector<6x128xbf16>, vector<10x128xf32> -> vector<10x128xf32>
    %c0_3 = arith.constant 0 : index
    %c0_4 = arith.constant 0 : index
    %3 = vector.load %arg4[%c0_3, %c0_4] : memref<10x4xbf16, #tpu.memory_space<vmem>>, vector<10x4xbf16>
    %c0_5 = arith.constant 0 : index
    %c0_6 = arith.constant 0 : index
    %4 = vector.load %arg2[%c0_5, %c0_6] : memref<4x128xbf16, #tpu.memory_space<vmem>>, vector<4x128xbf16>
    %cst_7 = arith.constant dense<0.000000e+00> : vector<10x128xf32>
    %5 = tpu.matmul %3, %4, %cst_7 {dimension_numbers = #tpu.dot_dimension_numbers<[1], [0], [0], [1], [0, 0, 1, 1], [], []>} : vector<10x4xbf16>, vector<4x128xbf16>, vector<10x128xf32> -> vector<10x128xf32>
    %6 = arith.addf %2, %5 : vector<10x128xf32>
    %c0_8 = arith.constant 0 : index
    %c0_9 = arith.constant 0 : index
    %7 = vector.load %arg5[%c0_8, %c0_9] : memref<10x1xf32, #tpu.memory_space<vmem>>, vector<10x1xf32>
    %8 = vector.broadcast %7 : vector<10x1xf32> to vector<10x128xf32>
    %9 = arith.addf %6, %8 : vector<10x128xf32>
    %cst_10 = arith.constant 0.000000e+00 : f32
    %10 = vector.broadcast %cst_10 : f32 to vector<10x128xf32>
    %11 = arith.maximumf %9, %10 : vector<10x128xf32>
    %12 = arith.truncf %11 : vector<10x128xf32> to vector<10x128xbf16>
    %c0_11 = arith.constant 0 : index
    %c0_12 = arith.constant 0 : index
    %13 = vector.load %arg6[%c0_11, %c0_12] : memref<10x10xbf16, #tpu.memory_space<vmem>>, vector<10x10xbf16>
    %cst_13 = arith.constant dense<0.000000e+00> : vector<10x128xf32>
    %14 = tpu.matmul %13, %12, %cst_13 {dimension_numbers = #tpu.dot_dimension_numbers<[1], [0], [0], [1], [0, 0, 1, 1], [], []>} : vector<10x10xbf16>, vector<10x128xbf16>, vector<10x128xf32> -> vector<10x128xf32>
    %c0_14 = arith.constant 0 : index
    %c0_15 = arith.constant 0 : index
    %15 = vector.load %arg7[%c0_14, %c0_15] : memref<10x1xf32, #tpu.memory_space<vmem>>, vector<10x1xf32>
    %16 = vector.broadcast %15 : vector<10x1xf32> to vector<10x128xf32>
    %17 = arith.addf %14, %16 : vector<10x128xf32>
    %cst_16 = arith.constant 0.000000e+00 : f32
    %18 = vector.broadcast %cst_16 : f32 to vector<10x128xf32>
    %19 = arith.maximumf %17, %18 : vector<10x128xf32>
    %20 = arith.truncf %19 : vector<10x128xf32> to vector<10x128xbf16>
    %c0_17 = arith.constant 0 : index
    %c0_18 = arith.constant 0 : index
    %21 = vector.load %arg8[%c0_17, %c0_18] : memref<1x10xbf16, #tpu.memory_space<vmem>>, vector<1x10xbf16>
    %cst_19 = arith.constant dense<0.000000e+00> : vector<1x128xf32>
    %22 = tpu.matmul %21, %20, %cst_19 {dimension_numbers = #tpu.dot_dimension_numbers<[1], [0], [0], [1], [0, 0, 1, 1], [], []>} : vector<1x10xbf16>, vector<10x128xbf16>, vector<1x128xf32> -> vector<1x128xf32>
    %c0_20 = arith.constant 0 : index
    %c0_21 = arith.constant 0 : index
    %23 = vector.load %arg9[%c0_20, %c0_21] : memref<1x1xf32, #tpu.memory_space<vmem>>, vector<1x1xf32>
    %24 = vector.broadcast %23 : vector<1x1xf32> to vector<1x128xf32>
    %25 = arith.addf %22, %24 : vector<1x128xf32>
    %c0_22 = arith.constant 0 : index
    %c0_23 = arith.constant 0 : index
    %26 = vector.load %arg10[%c0_22, %c0_23] : memref<1x128xf32, #tpu.memory_space<vmem>>, vector<1x128xf32>
    tpu.vector_store %arg10[%c0_22, %c0_23], %25 {strides = array<i32>} : memref<1x128xf32, #tpu.memory_space<vmem>>, vector<1x128xf32>,
    return
  }
  func.func @transform_0(%arg0: i32) -> (i32, i32) {
    %c0_i32 = arith.constant 0 : i32
    %c0_i32_0 = arith.constant 0 : i32
    return %c0_i32, %arg0 : i32, i32
  }
  func.func @transform_1(%arg0: i32) -> (i32, i32) {
    %c0_i32 = arith.constant 0 : i32
    %c0_i32_0 = arith.constant 0 : i32
    return %c0_i32, %arg0 : i32, i32
  }
  func.func @transform_2(%arg0: i32) -> (i32, i32) {
    %c0_i32 = arith.constant 0 : i32
    %c0_i32_0 = arith.constant 0 : i32
    %c0_i32_1 = arith.constant 0 : i32
    return %c0_i32, %c0_i32_0 : i32, i32
  }
  func.func @transform_3(%arg0: i32) -> (i32, i32) {
    %c0_i32 = arith.constant 0 : i32
    %c0_i32_0 = arith.constant 0 : i32
    %c0_i32_1 = arith.constant 0 : i32
    return %c0_i32, %c0_i32_0 : i32, i32
  }
  func.func @transform_4(%arg0: i32) -> (i32, i32) {
    %c0_i32 = arith.constant 0 : i32
    %c0_i32_0 = arith.constant 0 : i32
    %c0_i32_1 = arith.constant 0 : i32
    return %c0_i32, %c0_i32_0 : i32, i32
  }
  func.func @transform_5(%arg0: i32) -> (i32, i32) {
    %c0_i32 = arith.constant 0 : i32
    %c0_i32_0 = arith.constant 0 : i32
    %c0_i32_1 = arith.constant 0 : i32
    return %c0_i32, %c0_i32_0 : i32, i32
  }
  func.func @transform_6(%arg0: i32) -> (i32, i32) {
    %c0_i32 = arith.constant 0 : i32
    %c0_i32_0 = arith.constant 0 : i32
    %c0_i32_1 = arith.constant 0 : i32
    return %c0_i32, %c0_i32_0 : i32, i32
  }
  func.func @transform_7(%arg0: i32) -> (i32, i32) {
    %c0_i32 = arith.constant 0 : i32
    %c0_i32_0 = arith.constant 0 : i32
    %c0_i32_1 = arith.constant 0 : i32
    return %c0_i32, %c0_i32_0 : i32, i32
  }
  func.func @transform_8(%arg0: i32) -> (i32, i32) {
    %c0_i32 = arith.constant 0 : i32
    %c0_i32_0 = arith.constant 0 : i32
    %c0_i32_1 = arith.constant 0 : i32
    return %c0_i32, %c0_i32_0 : i32, i32
  }
  func.func @transform_9(%arg0: i32) -> (i32, i32) {
    %c0_i32 = arith.constant 0 : i32
    %c0_i32_0 = arith.constant 0 : i32
    return %c0_i32, %arg0 : i32, i32
  }
}

</mosaic_0001>

<llo_original>
// kernel: qnet_forward_fm.1
$region0: #{qnet_forward_fm.1}
  #allocation0 [shape = 'u32[]', space=smem, size = 0x4, offset = 0x4, fixed_abs, tag = 'smem constant byte address 0x4 - core index']
  #allocation1 [shape = 'u32[144,128]{1,0:T(1,128)}', space=vmem, size = 0x12000, scoped, tag = 'internal scratch']
  #allocation2 [shape = 'f32[1,1]{1,0:T(1,128)S(1)}', space=vmem, size = 0x200, scoped, tag = 'scoped memory for qnet_forward_fm.1']
  %s0 = inlined_call_operand.vmem [shape: bf16[6,8], index: 0, kind: input, shape index: {}]
  %s1 = inlined_call_operand.vmem [shape: bf16[4,8], index: 1, kind: input, shape index: {}]
  %s2 = inlined_call_operand.vmem [shape: bf16[10,6], index: 2, kind: input, shape index: {}]
  %s3 = inlined_call_operand.vmem [shape: bf16[10,4], index: 3, kind: input, shape index: {}]
  %s4 = inlined_call_operand.vmem [shape: f32[10,1], index: 4, kind: input, shape index: {}]
  %s5 = inlined_call_operand.vmem [shape: bf16[10,10], index: 5, kind: input, shape index: {}]
  %s6 = inlined_call_operand.vmem [shape: f32[10,1], index: 6, kind: input, shape index: {}]
  %s7 = inlined_call_operand.vmem [shape: bf16[1,10], index: 7, kind: input, shape index: {}]
  %s8 = inlined_call_operand.<no memory space> [shape: f32[1,1], index: 8, kind: input, shape index: {}]
  %s9 = inlined_call_operand.hbm [shape: f32[1,8], index: 9, kind: output, shape index: {}]
  %s10 = sld [smem:[#allocation0]]
  $region46: #{qnet_forward_fm.1} parent=0
    _
  %s12 = ssub.s32 1, %s10
  %s13 = scalar_select 0, %s12, %s10
  %v14 = vstv %s8
  %15 = vst [vmem:[#allocation2] sm:$0x1] %v14
  $region1: #{qnet_forward_fm.1} parent=0
    #allocation3 [shape = 'u8[512]{0}', space=vmem, size = 0x400, scoped, tag = 'output window, operand 0, single buffered']
    #allocation4 [shape = 's32[1]{0}', space=sflag, size = 0x4, scoped, tag = 'scoped memory for qnet_forward_fm.1']
    %16 = vsyncpa [#allocation4], 0
    // Predicated region
    $region2: #{qnet_forward_fm.1} parent=1 // pred_check
      _
    $region3: #{qnet_forward_fm.1} parent=1 // pred_check_branch
      %18 = sbr.rel (0) target = $region5
    $region4: #{qnet_forward_fm.1} parent=1 // pred_region
      _
    $region5: #{qnet_forward_fm.1} parent=1 // pred_fallthru
      _
    // Predicated region
    $region6: #{qnet_forward_fm.1} parent=1 // pred_check
      _
    $region7: #{qnet_forward_fm.1} parent=1 // pred_check_branch
      %20 = sbr.rel (0) target = $region9
    $region8: #{qnet_forward_fm.1} parent=1 // pred_region
      _
    $region9: #{qnet_forward_fm.1} parent=1 // pred_fallthru
      _
    // Predicated region
    $region10: #{qnet_forward_fm.1} parent=1 // pred_check
      _
    $region11: #{qnet_forward_fm.1} parent=1 // pred_check_branch
      %22 = sbr.rel (0) target = $region13
    $region12: #{qnet_forward_fm.1} parent=1 // pred_region
      _
    $region13: #{qnet_forward_fm.1} parent=1 // pred_fallthru
      _
    // Predicated region
    $region14: #{qnet_forward_fm.1} parent=1 // pred_check
      _
    $region15: #{qnet_forward_fm.1} parent=1 // pred_check_branch
      %24 = sbr.rel (0) target = $region17
    $region16: #{qnet_forward_fm.1} parent=1 // pred_region
      _
    $region17: #{qnet_forward_fm.1} parent=1 // pred_fallthru
      _
    // Predicated region
    $region18: #{qnet_forward_fm.1} parent=1 // pred_check
      _
    $region19: #{qnet_forward_fm.1} parent=1 // pred_check_branch
      %26 = sbr.rel (0) target = $region21
    $region20: #{qnet_forward_fm.1} parent=1 // pred_region
      _
    $region21: #{qnet_forward_fm.1} parent=1 // pred_fallthru
      _
    // Predicated region
    $region22: #{qnet_forward_fm.1} parent=1 // pred_check
      _
    $region23: #{qnet_forward_fm.1} parent=1 // pred_check_branch
      %28 = sbr.rel (0) target = $region25
    $region24: #{qnet_forward_fm.1} parent=1 // pred_region
      _
    $region25: #{qnet_forward_fm.1} parent=1 // pred_fallthru
      _
    // Predicated region
    $region26: #{qnet_forward_fm.1} parent=1 // pred_check
      _
    $region27: #{qnet_forward_fm.1} parent=1 // pred_check_branch
      %30 = sbr.rel (0) target = $region29
    $region28: #{qnet_forward_fm.1} parent=1 // pred_region
      _
    $region29: #{qnet_forward_fm.1} parent=1 // pred_fallthru
      _
    // Predicated region
    $region30: #{qnet_forward_fm.1} parent=1 // pred_check
      _
    $region31: #{qnet_forward_fm.1} parent=1 // pred_check_branch
      %32 = sbr.rel (0) target = $region33
    $region32: #{qnet_forward_fm.1} parent=1 // pred_region
      _
    $region33: #{qnet_forward_fm.1} parent=1 // pred_fallthru
      _
    // Predicated region
    $region34: #{qnet_forward_fm.1} parent=1 // pred_check
      _
    $region35: #{qnet_forward_fm.1} parent=1 // pred_check_branch
      %34 = sbr.rel (0) target = $region37
    $region36: #{qnet_forward_fm.1} parent=1 // pred_region
      _
    $region37: #{qnet_forward_fm.1} parent=1 // pred_fallthru
      _
    %v36 = vld [vmem:[%s2] sm:$0xf]
    %v37 = vld [vmem:[%s2 + $0x4] sm:$0x1]
    %v38 = vld [vmem:[%s0] sm:$0x7]
    %v39 = vld [vmem:[%s3] sm:$0xf]
    %v40 = vld [vmem:[%s3 + $0x4] sm:$0x1]
    %v41 = vld [vmem:[%s1] sm:$0x3]
    %v44 = vunpack.c.l.b16 %v39
    %v45 = vunpack.c.l.b16 %v40
    %v46 = vpack.c.b16 %v45, %v44
    %vm47 = vcmask 31744
    %v49 = vsel %vm47, %v46, 0
    %vm51 = vcmask 1041408
    %v53 = vsel %vm51, %v41, 0
    %55 = vmatprep.subr.bf16.mxu0 0
    %56 = vmatpush1.bf16.msra.mxu0 %v53
    %57 = vmatprep.subr.bf16.mxu0 0
    %58 = vmatpush1.bf16.msra.mxu0 0
    %59 = vmatprep.subr.bf16.mxu0 0
    %60 = vmatpush1.bf16.msra.mxu0 0
    %61 = vmatprep.subr.bf16.mxu0 0
    %62 = vmatpush1.bf16.msra.mxu0 0
    %63 = vmatprep.subr.bf16.mxu0 0
    %64 = vmatpush1.bf16.msra.mxu0 0
    %65 = vmatprep.subr.bf16.mxu0 0
    %66 = vmatpush1.bf16.msra.mxu0 0
    %67 = vmatprep.subr.bf16.mxu0 0
    %68 = vmatpush1.bf16.msra.mxu0 0
    %69 = vmatprep.subr.bf16.mxu0 0
    %70 = vmatpush1.bf16.msra.mxu0 0
    %71 = vmatprep.subr.bf16.mxu0 0
    %72 = vmatpush1.bf16.msra.mxu0 0
    %73 = vmatprep.subr.bf16.mxu0 0
    %74 = vmatpush1.bf16.msra.mxu0 0
    %75 = vmatprep.subr.bf16.mxu0 0
    %76 = vmatpush1.bf16.msra.mxu0 0
    %77 = vmatprep.subr.bf16.mxu0 0
    %78 = vmatpush1.bf16.msra.mxu0 0
    %79 = vmatprep.subr.bf16.mxu0 0
    %80 = vmatpush1.bf16.msra.mxu0 0
    %81 = vmatprep.subr.bf16.mxu0 0
    %82 = vmatpush1.bf16.msra.mxu0 0
    %83 = vmatprep.subr.bf16.mxu0 0
    %84 = vmatpush1.bf16.msra.mxu0 0
    %85 = vmatprep.subr.bf16.mxu0 0
    %86 = vmatpush1.bf16.msra.mxu0 0
    %87 = vmatprep.mubr.bf16.mxu0 0
    %88 = vmatmul.mubr.bf16.gmra.mrb[0].mxu0 %v49
    %v89 = vpop.f32.mrb[0].mxu0
    %v90 = vadd.f32 0.0, %v89
    %v91 = vpop.f32.mrb[0].mxu0
    %v92 = vpop.f32.mrb[0].mxu0
    %v93 = vadd.f32 0.0, %v92
    %v94 = vpop.f32.mrb[0].mxu0
    %95 = vdwg.mxu0
    %v98 = vunpack.c.l.b16 %v36
    %v99 = vunpack.c.l.b16 %v37
    %v100 = vpack.c.b16 %v99, %v98
    %vm101 = vcmask 48128
    %v103 = vsel %vm101, %v100, 0
    %vm105 = vcmask 1042432
    %v107 = vsel %vm105, %v38, 0
    %109 = vmatprep.subr.bf16.mxu0 0
    %110 = vmatpush1.bf16.msra.mxu0 %v107
    %111 = vmatprep.subr.bf16.mxu0 0
    %112 = vmatpush1.bf16.msra.mxu0 0
    %113 = vmatprep.subr.bf16.mxu0 0
    %114 = vmatpush1.bf16.msra.mxu0 0
    %115 = vmatprep.subr.bf16.mxu0 0
    %116 = vmatpush1.bf16.msra.mxu0 0
    %117 = vmatprep.subr.bf16.mxu0 0
    %118 = vmatpush1.bf16.msra.mxu0 0
    %119 = vmatprep.subr.bf16.mxu0 0
    %120 = vmatpush1.bf16.msra.mxu0 0
    %121 = vmatprep.subr.bf16.mxu0 0
    %122 = vmatpush1.bf16.msra.mxu0 0
    %123 = vmatprep.subr.bf16.mxu0 0
    %124 = vmatpush1.bf16.msra.mxu0 0
    %125 = vmatprep.subr.bf16.mxu0 0
    %126 = vmatpush1.bf16.msra.mxu0 0
    %127 = vmatprep.subr.bf16.mxu0 0
    %128 = vmatpush1.bf16.msra.mxu0 0
    %129 = vmatprep.subr.bf16.mxu0 0
    %130 = vmatpush1.bf16.msra.mxu0 0
    %131 = vmatprep.subr.bf16.mxu0 0
    %132 = vmatpush1.bf16.msra.mxu0 0
    %133 = vmatprep.subr.bf16.mxu0 0
    %134 = vmatpush1.bf16.msra.mxu0 0
    %135 = vmatprep.subr.bf16.mxu0 0
    %136 = vmatpush1.bf16.msra.mxu0 0
    %137 = vmatprep.subr.bf16.mxu0 0
    %138 = vmatpush1.bf16.msra.mxu0 0
    %139 = vmatprep.subr.bf16.mxu0 0
    %140 = vmatpush1.bf16.msra.mxu0 0
    %141 = vmatprep.mubr.bf16.mxu0 0
    %142 = vmatmul.mubr.bf16.gmra.mrb[0].mxu0 %v103
    %v143 = vpop.f32.mrb[0].mxu0
    %v144 = vadd.f32 %v90, %v143
    %v145 = vpop.f32.mrb[0].mxu0
    %v146 = vpop.f32.mrb[0].mxu0
    %v147 = vadd.f32 %v93, %v146
    %v148 = vpop.f32.mrb[0].mxu0
    %149 = vdwg.mxu0
    %v150 = vld [vmem:[%s4] sm:$0xff]
    %v151 = vld [vmem:[%s4 + $0x8] sm:$0x3]
    %153 = vset.pattern.permute.xlu0 0
    %154 = vperm.xlu0 %153, %v150
    %v155 = vpop.permute.xlu0 %154
    %158 = vset.pattern.permute.xlu0 0
    %159 = vperm.xlu0 %158, %v151
    %v160 = vpop.permute.xlu0 %159
    %v162 = vadd.f32 %v144, %v155
    %v163 = vadd.f32 %v147, %v160
    %v164 = vmax.f32 %v162, 0.0
    %v165 = vmax.f32 %v163, 0.0
    %v166 = vpack.c.bf16 %v165, %v164
    %v167 = vld [vmem:[%s5] sm:$0xf]
    %v168 = vld [vmem:[%s5 + $0x4] sm:$0x1]
    %v169 = vld [vmem:[%s6] sm:$0xff]
    %v170 = vld [vmem:[%s6 + $0x8] sm:$0x3]
    %172 = vset.pattern.permute.xlu0 0
    %173 = vperm.xlu0 %172, %v169
    %v174 = vpop.permute.xlu0 %173
    %177 = vset.pattern.permute.xlu0 0
    %178 = vperm.xlu0 %177, %v170
    %v179 = vpop.permute.xlu0 %178
    %v183 = vunpack.c.l.b16 %v167
    %v184 = vunpack.c.l.b16 %v168
    %v185 = vpack.c.b16 %v184, %v183
    %vm186 = vcmask 80896
    %v188 = vsel %vm186, %v185, 0
    %vm190 = vcmask 1044480
    %v192 = vsel %vm190, %v166, 0
    %194 = vmatprep.subr.bf16.mxu0 0
    %195 = vmatpush1.bf16.msra.mxu0 %v192
    %196 = vmatprep.subr.bf16.mxu0 0
    %197 = vmatpush1.bf16.msra.mxu0 0
    %198 = vmatprep.subr.bf16.mxu0 0
    %199 = vmatpush1.bf16.msra.mxu0 0
    %200 = vmatprep.subr.bf16.mxu0 0
    %201 = vmatpush1.bf16.msra.mxu0 0
    %202 = vmatprep.subr.bf16.mxu0 0
    %203 = vmatpush1.bf16.msra.mxu0 0
    %204 = vmatprep.subr.bf16.mxu0 0
    %205 = vmatpush1.bf16.msra.mxu0 0
    %206 = vmatprep.subr.bf16.mxu0 0
    %207 = vmatpush1.bf16.msra.mxu0 0
    %208 = vmatprep.subr.bf16.mxu0 0
    %209 = vmatpush1.bf16.msra.mxu0 0
    %210 = vmatprep.subr.bf16.mxu0 0
    %211 = vmatpush1.bf16.msra.mxu0 0
    %212 = vmatprep.subr.bf16.mxu0 0
    %213 = vmatpush1.bf16.msra.mxu0 0
    %214 = vmatprep.subr.bf16.mxu0 0
    %215 = vmatpush1.bf16.msra.mxu0 0
    %216 = vmatprep.subr.bf16.mxu0 0
    %217 = vmatpush1.bf16.msra.mxu0 0
    %218 = vmatprep.subr.bf16.mxu0 0
    %219 = vmatpush1.bf16.msra.mxu0 0
    %220 = vmatprep.subr.bf16.mxu0 0
    %221 = vmatpush1.bf16.msra.mxu0 0
    %222 = vmatprep.subr.bf16.mxu0 0
    %223 = vmatpush1.bf16.msra.mxu0 0
    %224 = vmatprep.subr.bf16.mxu0 0
    %225 = vmatpush1.bf16.msra.mxu0 0
    %226 = vmatprep.mubr.bf16.mxu0 0
    %227 = vmatmul.mubr.bf16.gmra.mrb[0].mxu0 %v188
    %v228 = vpop.f32.mrb[0].mxu0
    %v229 = vadd.f32 %v174, %v228
    %v230 = vpop.f32.mrb[0].mxu0
    %v231 = vpop.f32.mrb[0].mxu0
    %v232 = vadd.f32 %v179, %v231
    %v233 = vpop.f32.mrb[0].mxu0
    %234 = vdwg.mxu0
    %v235 = vmax.f32 %v229, 0.0
    %v236 = vmax.f32 %v232, 0.0
    %v237 = vpack.c.bf16 %v236, %v235
    %v238 = vld [vmem:[%s7] sm:$0x1]
    %v239 = vld [vmem:[#allocation2] sm:$0x1]
    %241 = vset.pattern.permute.xlu0 0
    %242 = vperm.xlu0 %241, %v239
    %v243 = vpop.permute.xlu0 %242
    %v245 = vlaneseq
    %v246 = vshrl.u32 %v245, 7
    %v247 = vsub.s32 0, %v246
    %v248 = vrot.slane %v243, %v247
    %v250 = vsel %vm186, %v238, 0
    %v253 = vsel %vm190, %v237, 0
    %255 = vmatprep.subr.bf16.mxu0 0
    %256 = vmatpush1.bf16.msra.mxu0 %v253
    %257 = vmatprep.subr.bf16.mxu0 0
    %258 = vmatpush1.bf16.msra.mxu0 0
    %259 = vmatprep.subr.bf16.mxu0 0
    %260 = vmatpush1.bf16.msra.mxu0 0
    %261 = vmatprep.subr.bf16.mxu0 0
    %262 = vmatpush1.bf16.msra.mxu0 0
    %263 = vmatprep.subr.bf16.mxu0 0
    %264 = vmatpush1.bf16.msra.mxu0 0
    %265 = vmatprep.subr.bf16.mxu0 0
    %266 = vmatpush1.bf16.msra.mxu0 0
    %267 = vmatprep.subr.bf16.mxu0 0
    %268 = vmatpush1.bf16.msra.mxu0 0
    %269 = vmatprep.subr.bf16.mxu0 0
    %270 = vmatpush1.bf16.msra.mxu0 0
    %271 = vmatprep.subr.bf16.mxu0 0
    %272 = vmatpush1.bf16.msra.mxu0 0
    %273 = vmatprep.subr.bf16.mxu0 0
    %274 = vmatpush1.bf16.msra.mxu0 0
    %275 = vmatprep.subr.bf16.mxu0 0
    %276 = vmatpush1.bf16.msra.mxu0 0
    %277 = vmatprep.subr.bf16.mxu0 0
    %278 = vmatpush1.bf16.msra.mxu0 0
    %279 = vmatprep.subr.bf16.mxu0 0
    %280 = vmatpush1.bf16.msra.mxu0 0
    %281 = vmatprep.subr.bf16.mxu0 0
    %282 = vmatpush1.bf16.msra.mxu0 0
    %283 = vmatprep.subr.bf16.mxu0 0
    %284 = vmatpush1.bf16.msra.mxu0 0
    %285 = vmatprep.subr.bf16.mxu0 0
    %286 = vmatpush1.bf16.msra.mxu0 0
    %287 = vmatprep.mubr.bf16.mxu0 0
    %288 = vmatmul.mubr.bf16.gmra.mrb[0].mxu0 %v250
    %v289 = vpop.f32.mrb[0].mxu0
    %v290 = vadd.f32 %v248, %v289
    %v291 = vpop.f32.mrb[0].mxu0
    %v292 = vpop.f32.mrb[0].mxu0
    %v293 = vpop.f32.mrb[0].mxu0
    %294 = vdwg.mxu0
    %295 = vst [vmem:[#allocation3] sm:$0x1] %v290
    // Predicated region
    $region38: #{qnet_forward_fm.1} parent=1 // pred_check
      _
    $region39: #{qnet_forward_fm.1} parent=1 // pred_check_branch
      %297 = sbr.rel (0) target = $region41
    $region40: #{qnet_forward_fm.1} parent=1 // pred_region
      %s299 = ssub.s32 16, 16
      %300 = vsyncadd [#allocation4], %s299
      %s302 = sshll.u32 [#allocation3], 4
      %s303 = int_to_ptr.vmem [resolvable:$true] %s302
      %305 = dma.vmem_to_hbm [thread:$0]  %s303, 16, %s9, [#allocation4]
    $region41: #{qnet_forward_fm.1} parent=1 // pred_fallthru
      _
    // Predicated region
    $region42: #{qnet_forward_fm.1} parent=1 // pred_check
      _
    $region43: #{qnet_forward_fm.1} parent=1 // pred_check_branch
      %307 = sbr.rel (0) target = $region45
    $region44: #{qnet_forward_fm.1} parent=1 // pred_region
      %308 = dma.done [#allocation4], 16
    $region45: #{qnet_forward_fm.1} parent=1 // pred_fallthru
      _
    %309 = vsyncpa [#allocation4], 1

</llo_original>
